<compile_context>
chip_gen: v5e
topology: v5e:2x2
jax: 0.10.0
libtpu: 0.0.40
codegen_flags: <defaults>
</compile_context>

<pallas_src>
import jax
import jax.numpy as jnp
from jax import lax
from jax.experimental import pallas as pl
from jax.experimental.pallas import tpu as pltpu


def samnet_kernel(x_ref, w1_ref, b1_ref, w2_ref, b2_ref, o_ref):
    # x_ref:  (TB, D)  bf16   input patch tile
    # w1_ref: (D, H)   bf16   first Linear weight, pre-transposed
    # b1_ref: (1, H)   f32    first Linear bias
    # w2_ref: (1, H)   f32    output Linear weight (n_out == 1)
    # b2_ref: (1, 1)   f32    output Linear bias
    # o_ref:  (1, TB)  f32    lane-dense output row for this tile
    h = jnp.dot(x_ref[...], w1_ref[...], preferred_element_type=jnp.float32)
    h = jnp.maximum(h + b1_ref[...], 0.0)                      # (TB, H) f32
    # Layer 2: contract H of (1, H) x (TB, H) -> (1, TB). Output is lane-dense,
    # no in-kernel transpose, no masked partial stores.
    out_row = lax.dot_general(
        w2_ref[...], h, (((1,), (1,)), ((), ())),
        preferred_element_type=jnp.float32)                    # (1, TB)
    o_ref[...] = (out_row + b2_ref[...]).astype(o_ref.dtype)


def _round_up(n, m):
    return ((n + m - 1) // m) * m


def samnet_forward(x, w1, b1, w2, b2, *, block_b=512):
    """y = relu(x @ w1.T + b1) @ w2.T + b2, PyTorch Linear layout weights."""
    B, D = x.shape
    H, D2 = w1.shape
    O = w2.shape[0]
    assert D2 == D and w2.shape[1] == H and O == 1

    # Batch tile: >=512 rows when the batch allows it (85%-of-roofline regime),
    # otherwise the whole (sublane-padded) batch in a single tile.
    tb = min(block_b, _round_up(B, 8))
    b_pad = _round_up(B, tb)
    grid = (b_pad // tb,)

    # Wrapper-side layout/dtype prep (done once in XLA, not per kernel step).
    x_p = jnp.pad(x, ((0, b_pad - B), (0, 0))).astype(jnp.bfloat16)
    w1t = w1.T.astype(jnp.bfloat16)                    # (D, H) pre-transposed
    b1_2d = b1.reshape(1, H).astype(jnp.float32)
    w2_2d = w2.reshape(1, H).astype(jnp.float32)
    b2_2d = b2.reshape(1, 1).astype(jnp.float32)

    out_row = pl.pallas_call(
        samnet_kernel,
        out_shape=jax.ShapeDtypeStruct((1, b_pad), jnp.float32),
        grid=grid,
        in_specs=[
            pl.BlockSpec((tb, D), lambda i: (i, 0)),   # streamed, double-buffered
            pl.BlockSpec((D, H), lambda i: (0, 0)),    # resident weight
            pl.BlockSpec((1, H), lambda i: (0, 0)),    # resident bias
            pl.BlockSpec((1, H), lambda i: (0, 0)),    # resident weight (layer 2)
            pl.BlockSpec((1, 1), lambda i: (0, 0)),    # resident bias (layer 2)
        ],
        out_specs=pl.BlockSpec((1, tb), lambda i: (0, i)),
        compiler_params=pltpu.CompilerParams(
            dimension_semantics=("parallel",)),
    )(x_p, w1t, b1_2d, w2_2d, b2_2d)

    return out_row[0, :B].reshape(B, O)


def init_params(key, n_patch_dim=36, n_hidden=36, n_out=1):
    # PyTorch-style uniform(+-1/sqrt(fan_in)) init, deterministic.
    k1, k2, k3, k4 = jax.random.split(key, 4)
    bound1 = 1.0 / (n_patch_dim ** 0.5)
    bound2 = 1.0 / (n_hidden ** 0.5)
    w1 = jax.random.uniform(k1, (n_hidden, n_patch_dim), jnp.float32, -bound1, bound1)
    b1 = jax.random.uniform(k2, (n_hidden,), jnp.float32, -bound1, bound1)
    w2 = jax.random.uniform(k3, (n_out, n_hidden), jnp.float32, -bound2, bound2)
    b2 = jax.random.uniform(k4, (n_out,), jnp.float32, -bound2, bound2)
    return w1, b1, w2, b2


def _reference(x, w1, b1, w2, b2):
    h = jnp.maximum(x @ w1.T + b1, 0.0)
    return h @ w2.T + b2


if __name__ == "__main__":
    key = jax.random.PRNGKey(0)
    kx, kx2, kp = jax.random.split(key, 3)

    n_patch_dim, n_hidden, n_out = 36, 36, 1
    w1, b1, w2, b2 = init_params(kp, n_patch_dim, n_hidden, n_out)

    # Small single-tile case (block == full padded batch).
    batch = 8
    x = jax.random.normal(kx, (batch, n_patch_dim), jnp.float32)
    out = jax.block_until_ready(samnet_forward(x, w1, b1, w2, b2))
    ref = _reference(x, w1, b1, w2, b2)
    assert out.shape == (batch, n_out)
    # bf16 activations/weights with f32 accumulation -> loosen tolerance.
    assert jnp.allclose(out, ref, atol=2e-2, rtol=2e-2)

    # Multi-tile gridded case (exercises batch padding + parallel grid axis).
    batch2 = 600
    x2 = jax.random.normal(kx2, (batch2, n_patch_dim), jnp.float32)
    out2 = jax.block_until_ready(samnet_forward(x2, w1, b1, w2, b2))
    ref2 = _reference(x2, w1, b1, w2, b2)
    assert out2.shape == (batch2, n_out)
    assert jnp.allclose(out2, ref2, atol=2e-2, rtol=2e-2)

    print("KERNEL_OK")
</pallas_src>

<mosaic_0001>
module attributes {stable_mosaic.version = 11 : i64} {
  func.func @samnet_kernel(%arg0: i32, %arg1: memref<8x36xbf16, #tpu.memory_space<vmem>>, %arg2: memref<36x36xbf16, #tpu.memory_space<vmem>>, %arg3: memref<1x36xf32, #tpu.memory_space<vmem>>, %arg4: memref<1x36xf32, #tpu.memory_space<vmem>>, %arg5: memref<1x1xf32, #tpu.memory_space<vmem>>, %arg6: memref<1x8xf32, #tpu.memory_space<vmem>>) attributes {dimension_semantics = [#tpu.dimension_semantics<parallel>], iteration_bounds = array<i64: 1>, scalar_prefetch = 0 : i64, scratch_operands = 0 : i64, tpu.core_type = #tpu.core_type<tc>, window_params = [{transform_indices = @transform_0, window_bounds = array<i64: 8, 36>}, {pipeline_mode = #tpu.pipeline_mode<synchronous>, transform_indices = @transform_1, window_bounds = array<i64: 36, 36>}, {pipeline_mode = #tpu.pipeline_mode<synchronous>, transform_indices = @transform_2, window_bounds = array<i64: 1, 36>}, {pipeline_mode = #tpu.pipeline_mode<synchronous>, transform_indices = @transform_3, window_bounds = array<i64: 1, 36>}, {pipeline_mode = #tpu.pipeline_mode<synchronous>, transform_indices = @transform_4, window_bounds = array<i64: 1, 1>}, {transform_indices = @transform_5, window_bounds = array<i64: 1, 8>}]} {
    %c0 = arith.constant 0 : index
    %c0_0 = arith.constant 0 : index
    %0 = vector.load %arg1[%c0, %c0_0] : memref<8x36xbf16, #tpu.memory_space<vmem>>, vector<8x36xbf16>
    %c0_1 = arith.constant 0 : index
    %c0_2 = arith.constant 0 : index
    %1 = vector.load %arg2[%c0_1, %c0_2] : memref<36x36xbf16, #tpu.memory_space<vmem>>, vector<36x36xbf16>
    %cst = arith.constant dense<0.000000e+00> : vector<8x36xf32>
    %2 = tpu.matmul %0, %1, %cst {dimension_numbers = #tpu.dot_dimension_numbers<[1], [0], [0], [1], [0, 0, 1, 1], [], []>} : vector<8x36xbf16>, vector<36x36xbf16>, vector<8x36xf32> -> vector<8x36xf32>
    %c0_3 = arith.constant 0 : index
    %c0_4 = arith.constant 0 : index
    %3 = vector.load %arg3[%c0_3, %c0_4] : memref<1x36xf32, #tpu.memory_space<vmem>>, vector<1x36xf32>
    %4 = vector.broadcast %3 : vector<1x36xf32> to vector<8x36xf32>
    %5 = arith.addf %2, %4 : vector<8x36xf32>
    %cst_5 = arith.constant 0.000000e+00 : f32
    %6 = vector.broadcast %cst_5 : f32 to vector<8x36xf32>
    %7 = arith.maximumf %5, %6 : vector<8x36xf32>
    %c0_6 = arith.constant 0 : index
    %c0_7 = arith.constant 0 : index
    %8 = vector.load %arg4[%c0_6, %c0_7] : memref<1x36xf32, #tpu.memory_space<vmem>>, vector<1x36xf32>
    %cst_8 = arith.constant dense<0.000000e+00> : vector<1x8xf32>
    %9 = tpu.matmul %8, %7, %cst_8 {dimension_numbers = #tpu.dot_dimension_numbers<[1], [1], [0], [0], [0, 0, 1, 0], [], []>} : vector<1x36xf32>, vector<8x36xf32>, vector<1x8xf32> -> vector<1x8xf32>
    %c0_9 = arith.constant 0 : index
    %c0_10 = arith.constant 0 : index
    %10 = vector.load %arg5[%c0_9, %c0_10] : memref<1x1xf32, #tpu.memory_space<vmem>>, vector<1x1xf32>
    %11 = vector.broadcast %10 : vector<1x1xf32> to vector<1x8xf32>
    %12 = arith.addf %9, %11 : vector<1x8xf32>
    %c0_11 = arith.constant 0 : index
    %c0_12 = arith.constant 0 : index
    %13 = vector.load %arg6[%c0_11, %c0_12] : memref<1x8xf32, #tpu.memory_space<vmem>>, vector<1x8xf32>
    tpu.vector_store %arg6[%c0_11, %c0_12], %12 {strides = array<i32>} : memref<1x8xf32, #tpu.memory_space<vmem>>, vector<1x8xf32>,
    return
  }
  func.func @transform_0(%arg0: i32) -> (i32, i32) {
    %c0_i32 = arith.constant 0 : i32
    %c0_i32_0 = arith.constant 0 : i32
    return %arg0, %c0_i32 : i32, i32
  }
  func.func @transform_1(%arg0: i32) -> (i32, i32) {
    %c0_i32 = arith.constant 0 : i32
    %c0_i32_0 = arith.constant 0 : i32
    %c0_i32_1 = arith.constant 0 : i32
    return %c0_i32, %c0_i32_0 : i32, i32
  }
  func.func @transform_2(%arg0: i32) -> (i32, i32) {
    %c0_i32 = arith.constant 0 : i32
    %c0_i32_0 = arith.constant 0 : i32
    %c0_i32_1 = arith.constant 0 : i32
    return %c0_i32, %c0_i32_0 : i32, i32
  }
  func.func @transform_3(%arg0: i32) -> (i32, i32) {
    %c0_i32 = arith.constant 0 : i32
    %c0_i32_0 = arith.constant 0 : i32
    %c0_i32_1 = arith.constant 0 : i32
    return %c0_i32, %c0_i32_0 : i32, i32
  }
  func.func @transform_4(%arg0: i32) -> (i32, i32) {
    %c0_i32 = arith.constant 0 : i32
    %c0_i32_0 = arith.constant 0 : i32
    %c0_i32_1 = arith.constant 0 : i32
    return %c0_i32, %c0_i32_0 : i32, i32
  }
  func.func @transform_5(%arg0: i32) -> (i32, i32) {
    %c0_i32 = arith.constant 0 : i32
    %c0_i32_0 = arith.constant 0 : i32
    return %c0_i32, %arg0 : i32, i32
  }
}

</mosaic_0001>

<llo_original>
// kernel: tpu_custom_call.1
$region0: #{tpu_custom_call.1}
  #allocation0 [shape = 'u32[]', space=smem, size = 0x4, offset = 0x4, fixed_abs, tag = 'smem constant byte address 0x4 - core index']
  #allocation1 [shape = 'u32[72,128]{1,0:T(1,128)}', space=vmem, size = 0x9000, scoped, tag = 'internal scratch']
  #allocation2 [shape = 'f32[1,1]{1,0:T(1,128)S(1)}', space=vmem, size = 0x200, scoped, tag = 'scoped memory for tpu_custom_call.1']
  %s0 = inlined_call_operand.hbm [shape: bf16[8,36], index: 0, kind: input, shape index: {}]
  %s1 = inlined_call_operand.hbm [shape: bf16[36,36], index: 1, kind: input, shape index: {}]
  %s2 = inlined_call_operand.vmem [shape: f32[1,36], index: 2, kind: input, shape index: {}]
  %s3 = inlined_call_operand.vmem [shape: f32[1,36], index: 3, kind: input, shape index: {}]
  %s4 = inlined_call_operand.<no memory space> [shape: f32[1,1], index: 4, kind: input, shape index: {}]
  %s5 = inlined_call_operand.hbm [shape: f32[1,8], index: 5, kind: output, shape index: {}]
  %s6 = sld [smem:[#allocation0]]
  $region38: #{tpu_custom_call.1} parent=0
    _
  %s8 = ssub.s32 1, %s6
  %s9 = scalar_select 0, %s8, %s6
  %v10 = vstv %s4
  %11 = vst [vmem:[#allocation2] sm:$0x1] %v10
  $region1: #{tpu_custom_call.1} parent=0
    #allocation3 [shape = 'u8[2048]{0}', space=vmem, size = 0x800, scoped, tag = 'input window, operand 0, single buffered']
    #allocation4 [shape = 's32[1]{0}', space=sflag, size = 0x4, scoped, tag = 'scoped memory for tpu_custom_call.1']
    #allocation5 [shape = 's32[1]{0}', space=sflag, size = 0x4, scoped, tag = 'scoped memory for tpu_custom_call.1']
    #allocation6 [shape = 'u8[10240]{0}', space=vmem, size = 0x2800, scoped, tag = 'input window, operand 1, single buffered']
    #allocation7 [shape = 's32[1]{0}', space=sflag, size = 0x4, scoped, tag = 'scoped memory for tpu_custom_call.1']
    #allocation8 [shape = 'u8[512]{0}', space=vmem, size = 0x400, scoped, tag = 'output window, operand 0, single buffered']
    %12 = vsyncpa [#allocation4], 0
    %13 = vsyncpa [#allocation7], 0
    %14 = vsyncpa [#allocation5], 0
    // Predicated region
    $region2: #{tpu_custom_call.1} parent=1 // pred_check
      _
    $region3: #{tpu_custom_call.1} parent=1 // pred_check_branch
      %16 = sbr.rel (0) target = $region5
    $region4: #{tpu_custom_call.1} parent=1 // pred_region
      %18 = vsyncadd [#allocation4], 0
      %s20 = sshll.u32 %s0, 4
      %s21 = int_to_ptr.hbm [resolvable:$true] %s20
      %s22 = sshll.u32 [#allocation3], 4
      %s23 = int_to_ptr.vmem [resolvable:$true] %s22
      %25 = dma.hbm_to_vmem [thread:$0]  %s21, 64, %s23, [#allocation4]
    $region5: #{tpu_custom_call.1} parent=1 // pred_fallthru
      _
    // Predicated region
    $region6: #{tpu_custom_call.1} parent=1 // pred_check
      _
    $region7: #{tpu_custom_call.1} parent=1 // pred_check_branch
      %27 = sbr.rel (0) target = $region9
    $region8: #{tpu_custom_call.1} parent=1 // pred_region
      %29 = vsyncadd [#allocation7], 0
      %s30 = sshll.u32 %s1, 4
      %s31 = int_to_ptr.hbm [resolvable:$true] %s30
      %s32 = sshll.u32 [#allocation6], 4
      %s33 = int_to_ptr.vmem [resolvable:$true] %s32
      %38 = dma.hbm_to_vmem [thread:$0]  %s31, 320, %s33, [#allocation7], 64, 64, 4
    $region9: #{tpu_custom_call.1} parent=1 // pred_fallthru
      _
    // Predicated region
    $region10: #{tpu_custom_call.1} parent=1 // pred_check
      _
    $region11: #{tpu_custom_call.1} parent=1 // pred_check_branch
      %40 = sbr.rel (0) target = $region13
    $region12: #{tpu_custom_call.1} parent=1 // pred_region
      _
    $region13: #{tpu_custom_call.1} parent=1 // pred_fallthru
      _
    // Predicated region
    $region14: #{tpu_custom_call.1} parent=1 // pred_check
      _
    $region15: #{tpu_custom_call.1} parent=1 // pred_check_branch
      %42 = sbr.rel (0) target = $region17
    $region16: #{tpu_custom_call.1} parent=1 // pred_region
      _
    $region17: #{tpu_custom_call.1} parent=1 // pred_fallthru
      _
    // Predicated region
    $region18: #{tpu_custom_call.1} parent=1 // pred_check
      _
    $region19: #{tpu_custom_call.1} parent=1 // pred_check_branch
      %44 = sbr.rel (0) target = $region21
    $region20: #{tpu_custom_call.1} parent=1 // pred_region
      _
    $region21: #{tpu_custom_call.1} parent=1 // pred_fallthru
      _
    // Predicated region
    $region22: #{tpu_custom_call.1} parent=1 // pred_check
      _
    $region23: #{tpu_custom_call.1} parent=1 // pred_check_branch
      %46 = sbr.rel (0) target = $region25
    $region24: #{tpu_custom_call.1} parent=1 // pred_region
      %48 = dma.done [#allocation4], 64
    $region25: #{tpu_custom_call.1} parent=1 // pred_fallthru
      _
    // Predicated region
    $region26: #{tpu_custom_call.1} parent=1 // pred_check
      _
    $region27: #{tpu_custom_call.1} parent=1 // pred_check_branch
      %50 = sbr.rel (0) target = $region29
    $region28: #{tpu_custom_call.1} parent=1 // pred_region
      %52 = dma.done [#allocation7], 320
    $region29: #{tpu_custom_call.1} parent=1 // pred_fallthru
      _
    %v54 = vld [vmem:[#allocation3] sm:$0xf]
    %v55 = vld [vmem:[#allocation6] sm:$0xf]
    %v56 = vld [vmem:[#allocation6 + $0x4] sm:$0xf]
    %v57 = vld [vmem:[#allocation6 + $0x8] sm:$0xf]
    %v58 = vld [vmem:[#allocation6 + $0xc] sm:$0xf]
    %v59 = vld [vmem:[#allocation6 + $0x10] sm:$0x3]
    %v60 = vld [vmem:[%s2] sm:$0x1]
    %v62 = vperm.slane %v60, 0
    %v69 = vunpack.c.l.b16 %v55
    %v70 = vunpack.c.l.b16 %v56
    %v71 = vunpack.c.l.b16 %v57
    %v72 = vunpack.c.l.b16 %v58
    %v73 = vunpack.c.l.b16 %v59
    %v74 = vpack.c.b16 %v70, %v69
    %v75 = vpack.c.b16 %v72, %v71
    %v76 = vpack.c.b16 %v73, %v73
    %vm79 = vcmask 293888
    %v81 = vsel %vm79, %v54, 0
    %vm83 = vcmask 1041408
    %v85 = vsel %vm83, %v76, 0
    %87 = vmatpush.bf16.msra.mxu0 0
    %88 = vmatpush.bf16.msra.mxu0 0
    %89 = vmatpush.bf16.msra.mxu0 0
    %90 = vmatpush.bf16.msra.mxu0 0
    %91 = vmatpush.bf16.msra.mxu0 0
    %92 = vmatpush.bf16.msra.mxu0 %v85
    %93 = vmatpush.bf16.msra.mxu0 %v75
    %94 = vmatpush.bf16.msra.mxu0 %v74
    %95 = vmatmul.bf16.gmra.mxu0 %v81
    %v96 = vpop.f32.mrf.mxu0
    %v97 = vadd.f32 %v62, %v96
    %v98 = vpop.f32.mrf.mxu0
    %99 = vdwg.mxu0
    %v100 = vmax.f32 %v97, 0.0
    %v101 = vld [vmem:[%s3] sm:$0x1]
    %v102 = vld [vmem:[#allocation2] sm:$0x1]
    %104 = vset.pattern.permute.xlu0 0
    %105 = vperm.xlu0 %104, %v102
    %v106 = vpop.permute.xlu0 %105
    %v108 = vperm.slane %v106, 0
    %v110 = vsel %vm79, %v101, 0
    %v113 = vsel %vm79, %v100, 0
    %115 = vmatpush.xpose.msra.mxu0 0.0
    %116 = vmatpush.xpose.msra.mxu0 0.0
    %117 = vmatpush.xpose.msra.mxu0 0.0
    %118 = vmatpush.xpose.msra.mxu0 0.0
    %119 = vmatpush.xpose.msra.mxu0 0.0
    %120 = vmatpush.xpose.msra.mxu0 0.0
    %121 = vmatpush.xpose.msra.mxu0 0.0
    %122 = vmatpush.xpose.msra.mxu0 0.0
    %123 = vmatpush.xpose.msra.mxu0 0.0
    %124 = vmatpush.xpose.msra.mxu0 0.0
    %125 = vmatpush.xpose.msra.mxu0 0.0
    %126 = vmatpush.xpose.msra.mxu0 0.0
    %127 = vmatpush.xpose.msra.mxu0 0.0
    %128 = vmatpush.xpose.msra.mxu0 0.0
    %129 = vmatpush.xpose.msra.mxu0 0.0
    %130 = vmatpush.xpose.msra.mxu0 %v113
    %131 = vmatmul.f32.gmra.mxu0 %v110
    %v132 = vpop.f32.mrf.mxu0
    %v133 = vadd.f32 %v108, %v132
    %134 = vdwg.mxu0
    %vm135 = vcmask 57344
    %136 = vst.msk [vmem:[#allocation8] sm:$0x1] %vm135, %v133
    // Predicated region
    $region30: #{tpu_custom_call.1} parent=1 // pred_check
      _
    $region31: #{tpu_custom_call.1} parent=1 // pred_check_branch
      %138 = sbr.rel (0) target = $region33
    $region32: #{tpu_custom_call.1} parent=1 // pred_region
      %140 = vsyncadd [#allocation5], 0
      %s142 = sshll.u32 [#allocation8], 4
      %s143 = int_to_ptr.vmem [resolvable:$true] %s142
      %s144 = sshll.u32 %s5, 4
      %s145 = int_to_ptr.hbm [resolvable:$true] %s144
      %147 = dma.vmem_to_hbm [thread:$0]  %s143, 16, %s145, [#allocation5]
    $region33: #{tpu_custom_call.1} parent=1 // pred_fallthru
      _
    // Predicated region
    $region34: #{tpu_custom_call.1} parent=1 // pred_check
      _
    $region35: #{tpu_custom_call.1} parent=1 // pred_check_branch
      %149 = sbr.rel (0) target = $region37
    $region36: #{tpu_custom_call.1} parent=1 // pred_region
      %151 = dma.done [#allocation5], 16
    $region37: #{tpu_custom_call.1} parent=1 // pred_fallthru
      _
    %152 = vsyncpa [#allocation4], 1
    %153 = vsyncpa [#allocation7], 1
    %154 = vsyncpa [#allocation5], 1

</llo_original>
